<compile_context>
chip_gen: v7x
topology: tpu7x:2x2x1
jax: 0.10.0
libtpu: 0.0.40
codegen_flags: <defaults>
</compile_context>

<pallas_src>
import jax
import jax.numpy as jnp
from jax.experimental import pallas as pl
from jax.experimental.pallas import tpu as pltpu


def _vmem_limit_bytes() -> int:
    """Generation-aware scoped-VMEM limit (~half of physical VMEM per core)."""
    try:
        cap = int(pltpu.get_tpu_info().vmem_capacity_bytes)
    except Exception:
        cap = 64 * 1024 * 1024  # conservative fallback (behaves like v7x)
    # v5e/v6e (128 MiB physical) -> 64 MiB limit; v7x (64 MiB / TC) -> 32 MiB.
    return max(32 * 1024 * 1024, min(cap // 2, 100 * 1024 * 1024))


_VMEM_LIMIT = _vmem_limit_bytes()


# ---------------------------------------------------------------------------
# Kernels
# ---------------------------------------------------------------------------
def _nlinear_shared_kernel(x_ref, w_ref, b_ref, o_ref):
    # x_ref: (TB, W, C)   w_ref: (F, W)   b_ref: (F, 1)   o_ref: (TB, F, C)
    w = w_ref[...].astype(jnp.float32)
    b = b_ref[...].astype(jnp.float32)

    def body(i, carry):
        x = x_ref[i].astype(jnp.float32)          # (W, C)
        last = x[-1:, :]                          # (1, C)  == seq_last for batch i
        xn = x - last                             # (W, C)
        # Layout-native MXU matmul: y[f, c] = sum_w weight[f, w] * xn[w, c]
        y = jnp.dot(w, xn, preferred_element_type=jnp.float32)   # (F, C)
        o_ref[i] = (y + b + last).astype(o_ref.dtype)
        return carry

    jax.lax.fori_loop(0, x_ref.shape[0], body, 0)


def _nlinear_individual_kernel(x_ref, w_ref, b_ref, o_ref):
    # x_ref: (1, W, TB)   w_ref: (1, F, W)   b_ref: (1, F, 1)   o_ref: (1, F, TB)
    x = x_ref[0].astype(jnp.float32)              # (W, TB)   batch on the lane axis
    last = x[-1:, :]                              # (1, TB)   == seq_last per batch lane
    xn = x - last                                 # (W, TB)
    w = w_ref[0].astype(jnp.float32)              # (F, W)    this channel's weight
    # Lane-dense MXU matmul: y[f, b] = sum_w weight_c[f, w] * xn_c[w, b]
    y = jnp.dot(w, xn, preferred_element_type=jnp.float32)       # (F, TB)
    y = y + b_ref[0].astype(jnp.float32) + last
    o_ref[0] = y.astype(o_ref.dtype)


# ---------------------------------------------------------------------------
# Wrappers
# ---------------------------------------------------------------------------
@jax.jit
def nlinear_shared(x, weight, bias):
    """x: [B, W, C], weight: [F, W], bias: [F]  ->  [B, F, C]"""
    B, W, C = x.shape
    F = weight.shape[0]
    b2d = bias.reshape(F, 1)

    limit = _VMEM_LIMIT
    budget = (limit * 7) // 10                    # leave headroom for Mosaic scratch
    fixed = 2 * (F * W + F) * 4                   # weight + bias blocks (double-buffered)
    per_b = 2 * (W * C + F * C) * 4               # x + out tiles per batch row (double-buffered)
    TB = max(1, min(B, (budget - fixed) // max(1, per_b)))
    if B >= 2:
        # Guarantee >=2 parallel grid steps so both v7x TensorCores are fed.
        TB = min(TB, pl.cdiv(B, 2))
    grid = (pl.cdiv(B, TB),)

    return pl.pallas_call(
        _nlinear_shared_kernel,
        out_shape=jax.ShapeDtypeStruct((B, F, C), x.dtype),
        grid=grid,
        in_specs=[
            pl.BlockSpec((TB, W, C), lambda i: (i, 0, 0)),
            pl.BlockSpec((F, W), lambda i: (0, 0)),
            pl.BlockSpec((F, 1), lambda i: (0, 0)),
        ],
        out_specs=pl.BlockSpec((TB, F, C), lambda i: (i, 0, 0)),
        compiler_params=pltpu.CompilerParams(
            dimension_semantics=("parallel",),
            vmem_limit_bytes=limit,
        ),
    )(x, weight, b2d)


@jax.jit
def nlinear_individual(x, weights, biases):
    """x: [B, W, C], weights: [C, F, W], biases: [C, F]  ->  [B, F, C]"""
    B, W, C = x.shape
    F = weights.shape[1]

    # Channel-major restructuring: per channel the contraction becomes a single
    # MXU matmul with the batch on the lane axis (lane-dense for B >= 128),
    # replacing the previous VPU broadcast-reduce with its (TB,F,W,TC) temporary.
    x_cm = jnp.transpose(x, (2, 1, 0))            # (C, W, B)
    b_cm = biases.reshape(C, F, 1)                # (C, F, 1)

    limit = _VMEM_LIMIT
    budget = (limit * 7) // 10
    fixed = 2 * (F * W + F) * 4                   # per-channel weight + bias (double-buffered)
    per_b = 2 * (W + F) * 4                       # x column + out column per batch lane
    cap = max(1, (budget - fixed) // per_b)
    # Full batch on the lane axis if it fits, otherwise a lane-dense 128-multiple.
    TB = B if B <= cap else min(B, max(128, (cap // 128) * 128))
    # Grid order (channel, batch-tile): batch innermost, so the (F, W) weight block
    # index is constant across the inner loop and stays resident (no re-DMA).
    grid = (C, pl.cdiv(B, TB))

    out_cm = pl.pallas_call(
        _nlinear_individual_kernel,
        out_shape=jax.ShapeDtypeStruct((C, F, B), x.dtype),
        grid=grid,
        in_specs=[
            pl.BlockSpec((1, W, TB), lambda c, j: (c, 0, j)),
            pl.BlockSpec((1, F, W), lambda c, j: (c, 0, 0)),     # per-channel weight, resident
            pl.BlockSpec((1, F, 1), lambda c, j: (c, 0, 0)),
        ],
        out_specs=pl.BlockSpec((1, F, TB), lambda c, j: (c, 0, j)),
        compiler_params=pltpu.CompilerParams(
            dimension_semantics=("parallel", "parallel"),
            vmem_limit_bytes=limit,
        ),
    )(x_cm, weights, b_cm)

    return jnp.transpose(out_cm, (2, 1, 0))       # (B, F, C)


# ---------------------------------------------------------------------------
# Pure-JAX references (mirror the PyTorch forward exactly)
# ---------------------------------------------------------------------------
def ref_shared(x, weight, bias):
    seq_last = x[:, -1:, :]
    xn = x - seq_last
    y = jnp.einsum("bwc,fw->bfc", xn, weight) + bias[None, :, None]
    return y + seq_last


def ref_individual(x, weights, biases):
    seq_last = x[:, -1:, :]
    xn = x - seq_last
    y = jnp.einsum("bwc,cfw->bfc", xn, weights) + biases.T[None, :, :]
    return y + seq_last


# ---------------------------------------------------------------------------
# Main
# ---------------------------------------------------------------------------
if __name__ == "__main__":
    B = 2           # batch
    W = 16          # window_size
    F = 8           # forcast_size
    C = 4           # feature_size / channels

    key = jax.random.PRNGKey(0)
    kx, kw_s, kb_s, kw_i, kb_i = jax.random.split(key, 5)

    x = jax.random.normal(kx, (B, W, C), dtype=jnp.float32)

    # Deterministic parameter init, mimicking nn.Linear's U(-1/sqrt(W), 1/sqrt(W)).
    bound = 1.0 / (W ** 0.5)
    w_shared = jax.random.uniform(kw_s, (F, W), jnp.float32, -bound, bound)
    b_shared = jax.random.uniform(kb_s, (F,), jnp.float32, -bound, bound)
    w_indiv = jax.random.uniform(kw_i, (C, F, W), jnp.float32, -bound, bound)
    b_indiv = jax.random.uniform(kb_i, (C, F), jnp.float32, -bound, bound)

    # individual = False path
    out_s = jax.block_until_ready(nlinear_shared(x, w_shared, b_shared))
    ref_s = ref_shared(x, w_shared, b_shared)
    assert out_s.shape == (B, F, C)
    assert jnp.allclose(out_s, ref_s, atol=1e-5, rtol=1e-5)

    # individual = True path
    out_i = jax.block_until_ready(nlinear_individual(x, w_indiv, b_indiv))
    ref_i = ref_individual(x, w_indiv, b_indiv)
    assert out_i.shape == (B, F, C)
    assert jnp.allclose(out_i, ref_i, atol=1e-5, rtol=1e-5)

    print("KERNEL_OK")
</pallas_src>

<mosaic_0001>
module attributes {stable_mosaic.version = 11 : i64} {
  func.func @_nlinear_shared_kernel(%arg0: i32, %arg1: memref<1x16x4xf32, #tpu.memory_space<vmem>>, %arg2: memref<8x16xf32, #tpu.memory_space<vmem>>, %arg3: memref<8x1xf32, #tpu.memory_space<vmem>>, %arg4: memref<1x8x4xf32, #tpu.memory_space<vmem>>) attributes {dimension_semantics = [#tpu.dimension_semantics<parallel>], iteration_bounds = array<i64: 2>, scalar_prefetch = 0 : i64, scratch_operands = 0 : i64, tpu.core_type = #tpu.core_type<tc>, window_params = [{transform_indices = @transform_0, window_bounds = array<i64: 1, 16, 4>}, {pipeline_mode = #tpu.pipeline_mode<synchronous>, transform_indices = @transform_1, window_bounds = array<i64: 8, 16>}, {pipeline_mode = #tpu.pipeline_mode<synchronous>, transform_indices = @transform_2, window_bounds = array<i64: 8, 1>}, {transform_indices = @transform_3, window_bounds = array<i64: 1, 8, 4>}]} {
    %c0 = arith.constant 0 : index
    %c0_0 = arith.constant 0 : index
    %0 = vector.load %arg2[%c0, %c0_0] : memref<8x16xf32, #tpu.memory_space<vmem>>, vector<8x16xf32>
    %c0_1 = arith.constant 0 : index
    %c0_2 = arith.constant 0 : index
    %1 = vector.load %arg3[%c0_1, %c0_2] : memref<8x1xf32, #tpu.memory_space<vmem>>, vector<8x1xf32>
    %c0_i32 = arith.constant 0 : i32
    %2 = arith.index_cast %c0_i32 : i32 to index
    %c0_3 = arith.constant 0 : index
    %c0_4 = arith.constant 0 : index
    %3 = vector.load %arg1[%2, %c0_3, %c0_4] : memref<1x16x4xf32, #tpu.memory_space<vmem>>, vector<1x16x4xf32>
    %4 = vector.shape_cast %3 : vector<1x16x4xf32> to vector<16x4xf32>
    %5 = vector.extract_strided_slice %4 {offsets = [15, 0], sizes = [1, 4], strides = [1, 1]} : vector<16x4xf32> to vector<1x4xf32>
    %6 = vector.broadcast %5 : vector<1x4xf32> to vector<16x4xf32>
    %7 = arith.subf %4, %6 : vector<16x4xf32>
    %cst = arith.constant dense<0.000000e+00> : vector<8x4xf32>
    %8 = tpu.matmul %0, %7, %cst {dimension_numbers = #tpu.dot_dimension_numbers<[1], [0], [0], [1], [0, 0, 1, 1], [], []>} : vector<8x16xf32>, vector<16x4xf32>, vector<8x4xf32> -> vector<8x4xf32>
    %9 = vector.broadcast %1 : vector<8x1xf32> to vector<8x4xf32>
    %10 = arith.addf %8, %9 : vector<8x4xf32>
    %11 = vector.broadcast %5 : vector<1x4xf32> to vector<8x4xf32>
    %12 = arith.addf %10, %11 : vector<8x4xf32>
    %13 = arith.index_cast %c0_i32 : i32 to index
    %c0_5 = arith.constant 0 : index
    %c0_6 = arith.constant 0 : index
    %14 = vector.load %arg4[%13, %c0_5, %c0_6] : memref<1x8x4xf32, #tpu.memory_space<vmem>>, vector<1x8x4xf32>
    %15 = vector.shape_cast %14 : vector<1x8x4xf32> to vector<8x4xf32>
    %16 = vector.shape_cast %12 : vector<8x4xf32> to vector<1x8x4xf32>
    tpu.vector_store %arg4[%13, %c0_5, %c0_6], %16 {strides = array<i32>} : memref<1x8x4xf32, #tpu.memory_space<vmem>>, vector<1x8x4xf32>,
    %c1_i32 = arith.constant 1 : i32
    return
  }
  func.func @transform_0(%arg0: i32) -> (i32, i32, i32) {
    %c0_i32 = arith.constant 0 : i32
    %c0_i32_0 = arith.constant 0 : i32
    %c0_i32_1 = arith.constant 0 : i32
    return %arg0, %c0_i32, %c0_i32_0 : i32, i32, i32
  }
  func.func @transform_1(%arg0: i32) -> (i32, i32) {
    %c0_i32 = arith.constant 0 : i32
    %c0_i32_0 = arith.constant 0 : i32
    %c0_i32_1 = arith.constant 0 : i32
    return %c0_i32, %c0_i32_0 : i32, i32
  }
  func.func @transform_2(%arg0: i32) -> (i32, i32) {
    %c0_i32 = arith.constant 0 : i32
    %c0_i32_0 = arith.constant 0 : i32
    %c0_i32_1 = arith.constant 0 : i32
    return %c0_i32, %c0_i32_0 : i32, i32
  }
  func.func @transform_3(%arg0: i32) -> (i32, i32, i32) {
    %c0_i32 = arith.constant 0 : i32
    %c0_i32_0 = arith.constant 0 : i32
    %c0_i32_1 = arith.constant 0 : i32
    return %arg0, %c0_i32, %c0_i32_0 : i32, i32, i32
  }
}

</mosaic_0001>

<llo_original>
// kernel: nlinear_shared.1
$region0: #{nlinear_shared.1}
  #allocation0 [shape = 'u32[]', space=smem, size = 0x4, offset = 0x4, fixed_abs, tag = 'smem constant byte address 0x4 - core index']
  #allocation1 [shape = 'u32[144,128]{1,0:T(1,128)}', space=vmem, size = 0x12000, scoped, tag = 'internal scratch']
  %s0 = inlined_call_operand.vmem [shape: f32[2,16,4], index: 0, kind: input, shape index: {}]
  %s1 = inlined_call_operand.vmem [shape: f32[8,16], index: 1, kind: input, shape index: {}]
  %s2 = inlined_call_operand.vmem [shape: f32[8,1], index: 2, kind: input, shape index: {}]
  %s3 = inlined_call_operand.vmem [shape: f32[2,8,4], index: 3, kind: output, shape index: {}]
  %s4 = sld [smem:[#allocation0]]
  $region45: #{nlinear_shared.1} parent=0
    _
  %s6 = ssub.s32 1, %s4
  %s7 = scalar_select 0, %s6, %s4
  loop: start=0, step=1, limit=4
  $region2: #{nlinear_shared.1} parent=0 // loop_pre_header
    _
  $region3: #{nlinear_shared.1} parent=0 // loop_header
    %s9 = sphi 0, %s13
    %p10 = scmp.ge.s32.totalorder %s9, 4
    %s19 = sphi 0, %s21
    %s22 = sphi 0, %s19
    %s23 = sphi 0, %s22
    %s39 = sphi 0, %s23
    %s43 = sphi 0, %s43
    %s45 = sphi 0, %s43
    %s46 = sphi 0, %s45
    %s60 = sphi 0, %s46
    %s64 = sphi 0, %s64
    %s66 = sphi 0, %s64
    %s67 = sphi 0, %s66
    %s81 = sphi 0, %s67
    %s87 = sphi 0, %s89
    %s90 = sphi 0, %s87
    %s91 = sphi 0, %s90
    %s107 = sphi 0, %s91
  $region4: #{nlinear_shared.1} parent=0 // loop_header_branch
    %12 = sbr.rel (%p10) target = $region8
  $region5: #{nlinear_shared.1} parent=0 // loop_body
    %s14 = ssub.s32 %s9, 1
    %s15 = ssub.s32 %s9, 2
    %s16 = sadd.s32 %s9, 1
    %s17 = ssub.s32 %s9, %s16
    %p18 = scmp.eq.s32.totalorder %s17, 0
    %s20 = sadd.s32 %s19, 1
    %s21 = scalar_select %p18, %s19, %s20
    %p24 = pneg %p18
    %p25 = scmp.eq.s32.totalorder %s9, 1
    %p26 = por %p24, %p25
    %p27 = scmp.ne.s32.totalorder %s19, %s22
    %p28 = scmp.eq.s32.totalorder %s9, 0
    %p29 = por %p27, %p28
    %p30 = scmp.ne.s32.totalorder %s19, %s22
    %p31 = scmp.eq.s32.totalorder %s14, 1
    %p32 = por %p30, %p31
    %p33 = scmp.ne.s32.totalorder %s22, %s23
    %p34 = scmp.eq.s32.totalorder %s14, 0
    %p35 = por %p33, %p34
    %p36 = scmp.ne.s32.totalorder %s22, %s23
    %p37 = scmp.eq.s32.totalorder %s15, 1
    %p38 = por %p36, %p37
    %p40 = scmp.ne.s32.totalorder %s23, %s39
    %p41 = scmp.eq.s32.totalorder %s15, 0
    %p42 = por %p40, %p41
    %s44 = sadd.s32 %s43, 1
    %p47 = scmp.eq.s32.totalorder %s9, 1
    %p48 = scmp.ne.s32.totalorder %s43, %s45
    %p49 = scmp.eq.s32.totalorder %s9, 0
    %p50 = por %p48, %p49
    %p51 = scmp.ne.s32.totalorder %s43, %s45
    %p52 = scmp.eq.s32.totalorder %s14, 1
    %p53 = por %p51, %p52
    %p54 = scmp.ne.s32.totalorder %s45, %s46
    %p55 = scmp.eq.s32.totalorder %s14, 0
    %p56 = por %p54, %p55
    %p57 = scmp.ne.s32.totalorder %s45, %s46
    %p58 = scmp.eq.s32.totalorder %s15, 1
    %p59 = por %p57, %p58
    %p61 = scmp.ne.s32.totalorder %s46, %s60
    %p62 = scmp.eq.s32.totalorder %s15, 0
    %p63 = por %p61, %p62
    %s65 = sadd.s32 %s64, 1
    %p68 = scmp.eq.s32.totalorder %s9, 1
    %p69 = scmp.ne.s32.totalorder %s64, %s66
    %p70 = scmp.eq.s32.totalorder %s9, 0
    %p71 = por %p69, %p70
    %p72 = scmp.ne.s32.totalorder %s64, %s66
    %p73 = scmp.eq.s32.totalorder %s14, 1
    %p74 = por %p72, %p73
    %p75 = scmp.ne.s32.totalorder %s66, %s67
    %p76 = scmp.eq.s32.totalorder %s14, 0
    %p77 = por %p75, %p76
    %p78 = scmp.ne.s32.totalorder %s66, %s67
    %p79 = scmp.eq.s32.totalorder %s15, 1
    %p80 = por %p78, %p79
    %p82 = scmp.ne.s32.totalorder %s67, %s81
    %p83 = scmp.eq.s32.totalorder %s15, 0
    %p84 = por %p82, %p83
    %s85 = ssub.s32 %s9, %s16
    %p86 = scmp.eq.s32.totalorder %s85, 0
    %s88 = sadd.s32 %s87, 1
    %s89 = scalar_select %p86, %s87, %s88
    %p92 = pneg %p86
    %p93 = scmp.eq.s32.totalorder %s9, 1
    %p94 = por %p92, %p93
    %p95 = scmp.ne.s32.totalorder %s87, %s90
    %p96 = scmp.eq.s32.totalorder %s9, 0
    %p97 = por %p95, %p96
    %p98 = scmp.ne.s32.totalorder %s87, %s90
    %p99 = scmp.eq.s32.totalorder %s14, 1
    %p100 = por %p98, %p99
    %p101 = scmp.ne.s32.totalorder %s90, %s91
    %p102 = scmp.eq.s32.totalorder %s14, 0
    %p103 = por %p101, %p102
    %p104 = scmp.ne.s32.totalorder %s90, %s91
    %p105 = scmp.eq.s32.totalorder %s15, 1
    %p106 = por %p104, %p105
    %p108 = scmp.ne.s32.totalorder %s91, %s107
    %p109 = scmp.eq.s32.totalorder %s15, 0
    %p110 = por %p108, %p109
    %p111 = scmp.le.s32.totalorder 1, %s9
    %p112 = scmp.lt.s32.totalorder %s9, 3
    %p113 = pnand %p111, %p112
    %p114 = pneg %p113
    // Predicated region
    $region9: #{nlinear_shared.1} parent=5 // pred_check
      _
    $region10: #{nlinear_shared.1} parent=5 // pred_check_branch
      %116 = sbr.rel (%p113) target = $region12
    $region11: #{nlinear_shared.1} parent=5 // pred_region
      %s117 = ssub.s32 %s9, 1
      // Predicated region
      $region13: #{nlinear_shared.1} parent=11 // pred_check
        %p118 = pneg %p56
      $region14: #{nlinear_shared.1} parent=11 // pred_check_branch
        %120 = sbr.rel (%p118) target = $region16
      $region15: #{nlinear_shared.1} parent=11 // pred_region
        _
      $region16: #{nlinear_shared.1} parent=11 // pred_fallthru
        _
      // Predicated region
      $region17: #{nlinear_shared.1} parent=11 // pred_check
        %p121 = pneg %p77
      $region18: #{nlinear_shared.1} parent=11 // pred_check_branch
        %123 = sbr.rel (%p121) target = $region20
      $region19: #{nlinear_shared.1} parent=11 // pred_region
        _
      $region20: #{nlinear_shared.1} parent=11 // pred_fallthru
        _
    $region12: #{nlinear_shared.1} parent=5 // pred_fallthru
      _
    %p124 = scmp.lt.s32.totalorder %s9, 2
    // Predicated region
    $region21: #{nlinear_shared.1} parent=5 // pred_check
      %p125 = pneg %p124
    $region22: #{nlinear_shared.1} parent=5 // pred_check_branch
      %127 = sbr.rel (%p125) target = $region24
    $region23: #{nlinear_shared.1} parent=5 // pred_region
      // Predicated region
      $region25: #{nlinear_shared.1} parent=23 // pred_check
        %p128 = pneg %p29
      $region26: #{nlinear_shared.1} parent=23 // pred_check_branch
        %130 = sbr.rel (%p128) target = $region28
      $region27: #{nlinear_shared.1} parent=23 // pred_region
        %p131 = scmp.lt.s32.totalorder %s9, 1
        %s132 = scalar_select %p131, %s9, 1
        %s133 = smul.addr %s132, 2
        %s134 = smul.addr %s133, 8
        %s135 = scalar_lea.vmem %s0, %s134
      $region28: #{nlinear_shared.1} parent=23 // pred_fallthru
        _
    $region24: #{nlinear_shared.1} parent=5 // pred_fallthru
      _
    %p136 = scmp.le.s32.totalorder 1, %s9
    %p137 = scmp.lt.s32.totalorder %s9, 3
    %p138 = pnand %p136, %p137
    %p139 = pneg %p138
    // Predicated region
    $region29: #{nlinear_shared.1} parent=5 // pred_check
      _
    $region30: #{nlinear_shared.1} parent=5 // pred_check_branch
      %141 = sbr.rel (%p138) target = $region32
    $region31: #{nlinear_shared.1} parent=5 // pred_region
      %s142 = ssub.s32 %s9, 1
      %p143 = scmp.lt.s32.totalorder %s14, 1
      %s144 = scalar_select %p143, %s14, 1
      %s145 = smul.addr %s144, 2
      %s146 = smul.addr %s145, 8
      %s147 = scalar_lea.vmem %s0, %s146
      %p148 = pneg %p35
      %p149 = pneg %p32
      %p150 = pneg %p56
      %p151 = pneg %p53
      %p152 = pneg %p77
      %p153 = pneg %p74
      %p154 = pneg %p103
      %p155 = pneg %p100
      %p156 = scmp.lt.s32.totalorder %s14, 1
      %s157 = scalar_select %p156, %s14, 1
      %s158 = smul.addr %s157, 8
      %s159 = scalar_lea.vmem %s3, %s158
      %p160 = scmp.lt.s32.totalorder %s14, 1
      %s161 = scalar_select %p160, %s14, 1
      %s162 = smul.addr %s161, 2
      %s163 = smul.addr %s162, 8
      %s164 = scalar_lea.vmem %s0, %s163
      %p165 = scmp.lt.s32.totalorder %s14, 1
      %s166 = scalar_select %p165, %s14, 1
      %s167 = smul.addr %s166, 8
      %s168 = scalar_lea.vmem %s3, %s167
      %v169 = vld [vmem:[%s1] sm:$0xff]
      %v170 = vld [vmem:[%s2] sm:$0xff]
      %v171 = vld [vmem:[%s164] sm:$0xff]
      %v172 = vld [vmem:[%s164 + $0x8] sm:$0xff]
      %v173 = vlaneseq
      %v174 = vshrl.u32 %v173, 7
      %v175 = vsub.s32 7, %v174
      %v176 = vrot.slane %v172, %v175
      %v177 = vsub.f32 %v171, %v176
      %v178 = vsub.f32 %v172, %v176
      %180 = vset.pattern.permute.xlu0 0
      %181 = vperm.xlu0 %180, %v170
      %v182 = vpop.permute.xlu0 %181
      %vm184 = vcmask 130048
      %v186 = vsel %vm184, %v169, 0
      %188 = vmatprep.subr.mxu0 0.0
      %189 = vmatpush1.msra.mxu0 %v177
      %190 = vmatprep.subr.mxu0 0.0
      %191 = vmatpush1.msra.mxu0 %v178
      %192 = vmatprep.subr.mxu0 0.0
      %193 = vmatpush1.msra.mxu0 0.0
      %194 = vmatprep.subr.mxu0 0.0
      %195 = vmatpush1.msra.mxu0 0.0
      %196 = vmatprep.subr.mxu0 0.0
      %197 = vmatpush1.msra.mxu0 0.0
      %198 = vmatprep.subr.mxu0 0.0
      %199 = vmatpush1.msra.mxu0 0.0
      %200 = vmatprep.subr.mxu0 0.0
      %201 = vmatpush1.msra.mxu0 0.0
      %202 = vmatprep.subr.mxu0 0.0
      %203 = vmatpush1.msra.mxu0 0.0
      %204 = vmatprep.subr.mxu0 0.0
      %205 = vmatpush1.msra.mxu0 0.0
      %206 = vmatprep.subr.mxu0 0.0
      %207 = vmatpush1.msra.mxu0 0.0
      %208 = vmatprep.subr.mxu0 0.0
      %209 = vmatpush1.msra.mxu0 0.0
      %210 = vmatprep.subr.mxu0 0.0
      %211 = vmatpush1.msra.mxu0 0.0
      %212 = vmatprep.subr.mxu0 0.0
      %213 = vmatpush1.msra.mxu0 0.0
      %214 = vmatprep.subr.mxu0 0.0
      %215 = vmatpush1.msra.mxu0 0.0
      %216 = vmatprep.subr.mxu0 0.0
      %217 = vmatpush1.msra.mxu0 0.0
      %218 = vmatprep.subr.mxu0 0.0
      %219 = vmatpush1.msra.mxu0 0.0
      %220 = vmatprep.subr.mxu0 0.0
      %221 = vmatpush1.msra.mxu0 0.0
      %222 = vmatprep.subr.mxu0 0.0
      %223 = vmatpush1.msra.mxu0 0.0
      %224 = vmatprep.subr.mxu0 0.0
      %225 = vmatpush1.msra.mxu0 0.0
      %226 = vmatprep.subr.mxu0 0.0
      %227 = vmatpush1.msra.mxu0 0.0
      %228 = vmatprep.subr.mxu0 0.0
      %229 = vmatpush1.msra.mxu0 0.0
      %230 = vmatprep.subr.mxu0 0.0
      %231 = vmatpush1.msra.mxu0 0.0
      %232 = vmatprep.subr.mxu0 0.0
      %233 = vmatpush1.msra.mxu0 0.0
      %234 = vmatprep.subr.mxu0 0.0
      %235 = vmatpush1.msra.mxu0 0.0
      %236 = vmatprep.subr.mxu0 0.0
      %237 = vmatpush1.msra.mxu0 0.0
      %238 = vmatprep.subr.mxu0 0.0
      %239 = vmatpush1.msra.mxu0 0.0
      %240 = vmatprep.subr.mxu0 0.0
      %241 = vmatpush1.msra.mxu0 0.0
      %242 = vmatprep.subr.mxu0 0.0
      %243 = vmatpush1.msra.mxu0 0.0
      %244 = vmatprep.subr.mxu0 0.0
      %245 = vmatpush1.msra.mxu0 0.0
      %246 = vmatprep.subr.mxu0 0.0
      %247 = vmatpush1.msra.mxu0 0.0
      %248 = vmatprep.subr.mxu0 0.0
      %249 = vmatpush1.msra.mxu0 0.0
      %250 = vmatprep.subr.mxu0 0.0
      %251 = vmatpush1.msra.mxu0 0.0
      %252 = vmatprep.mubr.f32.mxu0 0.0
      %253 = vmatmul.mubr.f32.gmra.mrb[0].mxu0 %v186
      %v254 = vpop.f32.mrb[0].mxu0
      %v255 = vadd.f32 %v182, %v254
      %v256 = vpop.f32.mrb[0].mxu0
      %257 = vdwg.mxu0
      %v258 = vadd.f32 %v255, %v176
      %vm259 = vcmask 31744
      %260 = vst.msk [vmem:[%s168] sm:$0xff] %vm259, %v258
      %p261 = scmp.lt.s32.totalorder %s14, 1
      %s262 = scalar_select %p261, %s14, 1
      %s263 = smul.addr %s262, 8
      %s264 = scalar_lea.vmem %s3, %s263
      // Predicated region
      $region33: #{nlinear_shared.1} parent=31 // pred_check
        %p265 = pneg %p100
      $region34: #{nlinear_shared.1} parent=31 // pred_check_branch
        %267 = sbr.rel (%p265) target = $region36
      $region35: #{nlinear_shared.1} parent=31 // pred_region
        _
      $region36: #{nlinear_shared.1} parent=31 // pred_fallthru
        _
    $region32: #{nlinear_shared.1} parent=5 // pred_fallthru
      _
    %p268 = scmp.le.s32.totalorder 2, %s9
    // Predicated region
    $region37: #{nlinear_shared.1} parent=5 // pred_check
      %p269 = pneg %p268
    $region38: #{nlinear_shared.1} parent=5 // pred_check_branch
      %271 = sbr.rel (%p269) target = $region40
    $region39: #{nlinear_shared.1} parent=5 // pred_region
      %s272 = ssub.s32 %s9, 2
      // Predicated region
      $region41: #{nlinear_shared.1} parent=39 // pred_check
        %p273 = pneg %p106
      $region42: #{nlinear_shared.1} parent=39 // pred_check_branch
        %275 = sbr.rel (%p273) target = $region44
      $region43: #{nlinear_shared.1} parent=39 // pred_region
        %p276 = scmp.lt.s32.totalorder %s15, 1
        %s277 = scalar_select %p276, %s15, 1
        %s278 = smul.addr %s277, 8
        %s279 = scalar_lea.vmem %s3, %s278
      $region44: #{nlinear_shared.1} parent=39 // pred_fallthru
        _
    $region40: #{nlinear_shared.1} parent=5 // pred_fallthru
      _
  $region6: #{nlinear_shared.1} parent=0 // loop_footer
    %s13 = sadd.s32 1, %s9
  $region7: #{nlinear_shared.1} parent=0 // loop_footer_branch
    %8 = sbr.rel target = $region3
  $region8: #{nlinear_shared.1} parent=0 // loop_exit
    _

</llo_original>
